<compile_context>
chip_gen: v7x
topology: tpu7x:2x2x1
jax: 0.10.0
libtpu: 0.0.40
codegen_flags: <defaults>
</compile_context>

<pallas_src>
import numpy as np
import jax
import jax.numpy as jnp
from jax.experimental import pallas as pl
from jax.experimental.pallas import tpu as pltpu


# ----------------------- static basis construction (numpy) -----------------------

def _round_up(x, m):
    return (x + m - 1) // m * m


def _hamming_window(win_length):
    # torch.hamming_window default: periodic=True, alpha=0.54, beta=0.46
    n = np.arange(win_length, dtype=np.float64)
    return 0.54 - 0.46 * np.cos(2.0 * np.pi * n / win_length)


def _hz_to_mel(f):
    return 2595.0 * np.log10(1.0 + f / 700.0)


def _mel_to_hz(m):
    return 700.0 * (10.0 ** (m / 2595.0) - 1.0)


def _mel_filterbank(n_freqs, n_mels, sample_rate, f_min=0.0, f_max=None):
    # torchaudio.functional.melscale_fbanks (mel_scale="htk", norm=None): (n_freqs, n_mels)
    if f_max is None:
        f_max = sample_rate / 2.0
    all_freqs = np.linspace(0.0, sample_rate / 2.0, n_freqs)
    m_pts = np.linspace(_hz_to_mel(f_min), _hz_to_mel(f_max), n_mels + 2)
    f_pts = _mel_to_hz(m_pts)
    f_diff = f_pts[1:] - f_pts[:-1]                       # (n_mels+1,)
    slopes = f_pts[None, :] - all_freqs[:, None]          # (n_freqs, n_mels+2)
    down = -slopes[:, :-2] / f_diff[:-1]
    up = slopes[:, 2:] / f_diff[1:]
    return np.maximum(0.0, np.minimum(down, up))          # (n_freqs, n_mels)


def _fused_bases(n_fft, win_length, n_mels, sample_rate, hop_length):
    """Fused, hop-blocked DFT + mel bases.

    Returns
      w3    : (r, k2p, hop)       hop-column blocks of [cos*win ; -sin*win]
                                  (zero rows up to k2p, zero cols beyond n_fft)
      fb2_t : (n_mels_pad, k2p)   mel filterbank duplicated over re/im halves
    so that  mel = fb2_t @ ((sum_j w3[j] @ frame_block_j)^2) == fb.T @ |STFT|^2.
    """
    n_freqs = n_fft // 2 + 1
    window = _hamming_window(win_length)
    if win_length < n_fft:
        # torch.stft centers the window inside the n_fft frame
        lpad = (n_fft - win_length) // 2
        window = np.pad(window, (lpad, n_fft - win_length - lpad))

    n = np.arange(n_fft, dtype=np.float64)[None, :]        # (1, n_fft)
    k = np.arange(n_freqs, dtype=np.float64)[:, None]      # (n_freqs, 1)
    ang = 2.0 * np.pi * n * k / float(n_fft)
    wcos = np.cos(ang) * window[None, :]
    wsin = -np.sin(ang) * window[None, :]                  # -sin -> Im(STFT)
    w_t = np.concatenate([wcos, wsin], axis=0)             # (2*n_freqs, n_fft)

    fb = _mel_filterbank(n_freqs, n_mels, sample_rate)     # (n_freqs, n_mels)
    fb2_t = np.concatenate([fb, fb], axis=0).T             # (n_mels, 2*n_freqs)

    k2 = 2 * n_freqs
    k2p = _round_up(k2, 16)                 # 16-row bf16 sublane pack (perf review)
    n_mels_pad = _round_up(n_mels, 8)
    r = -(-n_fft // hop_length)             # ceil(n_fft / hop)
    n_fft_eff = r * hop_length              # frame rounded up to whole hop-rows
    w_t = np.pad(w_t, ((0, k2p - k2), (0, n_fft_eff - n_fft)))       # zero weights
    fb2_t = np.pad(fb2_t, ((0, n_mels_pad - n_mels), (0, k2p - k2)))  # zero filters
    w3 = w_t.reshape(k2p, r, hop_length).transpose(1, 0, 2)           # (r, k2p, hop)
    return w3.astype(np.float32), fb2_t.astype(np.float32)


# ------------------------------- Pallas kernel -------------------------------

def _make_logmel_kernel(*, t_tile, n_rows_tile, n_rows_total, hop, r, compute_dtype):
    def kernel(xp_ref, w_ref, fb_ref, o_ref, strip_ref, sem):
        # xp_ref   : (B*n_rows_total, hop)  reflect+zero padded waveform rows, HBM (pl.ANY)
        # w_ref    : (r, k2p, hop)          hop-blocked windowed [cos;-sin] DFT basis
        # fb_ref   : (n_mels_pad, k2p)      duplicated mel filterbank (f32)
        # o_ref    : (1, n_mels_pad, t_tile)
        # strip_ref: (n_rows_tile, hop)     VMEM scratch for one contiguous sample strip
        b = pl.program_id(0)
        t = pl.program_id(1)
        row_start = pl.multiple_of(b * n_rows_total + t * t_tile, 8)

        # One contiguous DMA per time tile: t_tile*hop + (n_fft - hop)-ish samples.
        cp = pltpu.make_async_copy(
            xp_ref.at[pl.ds(row_start, n_rows_tile), :], strip_ref, sem)
        cp.start()
        cp.wait()

        # S = W @ frames, assembled implicitly: frame t, sample n = j*hop + h lives at
        # strip[t + j, h].  Contract each shifted hop-row sub-block against its basis
        # block (NT dot_general, flash-attention style) -- no explicit transpose.
        acc = None
        for j in range(r):                                   # r = ceil(n_fft / hop), static
            f_j = strip_ref[pl.ds(j, t_tile), :].astype(compute_dtype)   # (t_tile, hop)
            part = jax.lax.dot_general(
                w_ref[j], f_j, (((1,), (1,)), ((), ())),
                preferred_element_type=jnp.float32)          # (k2p, t_tile)
            acc = part if acc is None else acc + part

        p = acc * acc                                        # Re^2 / Im^2 stacked
        mel = jnp.dot(fb_ref[...], p,
                      preferred_element_type=jnp.float32)    # (n_mels_pad, t_tile)
        o_ref[0] = jnp.log(mel + 1e-12)                      # matches torch.log(x + 1e-12)

    return kernel


def log_mel_spec(x, *, sample_rate, n_fft, n_mels, win_length, hop_length,
                 compute_dtype=jnp.bfloat16, time_tile=2048):
    x = x.astype(jnp.float32)
    B, L = x.shape
    hop = hop_length

    w3_np, fb2_np = _fused_bases(n_fft, win_length, n_mels, sample_rate, hop)
    r, k2p, _ = w3_np.shape
    n_mels_pad = fb2_np.shape[0]

    # Reflect padding (torch.stft center=True defaults); frames start every `hop`.
    pad = n_fft // 2
    xp = jnp.pad(x, ((0, 0), (pad, pad)), mode="reflect")
    Lp = L + 2 * pad
    T = 1 + (Lp - n_fft) // hop

    # ---- time tiling: lane-dense, >=2 grid steps when possible, VMEM-gated ----
    t128 = _round_up(T, 128)
    t_tile = min(_round_up(time_tile, 128), t128)            # always a 128-multiple
    if B == 1 and t_tile >= t128 and t128 > 128:
        # keep both TensorCores busy on 2-TC chips (v7x) even at batch 1
        t_tile = _round_up((t128 + 1) // 2, 128)

    def _vmem_bytes(tt):                                     # conservative per-step estimate
        nrt = tt + _round_up(r, 8)
        return (nrt * max(hop, 128) * 4                      # strip scratch (f32, lane-padded)
                + 2 * n_mels_pad * tt * 4                    # double-buffered output block
                + 3 * k2p * tt * 4)                          # s / s^2 / acc temporaries
    while t_tile > 128 and _vmem_bytes(t_tile) > 20 * 1024 * 1024:
        t_tile = _round_up(t_tile // 2, 128)

    t_pad = _round_up(T, t_tile)
    n_tiles = t_pad // t_tile

    r8 = _round_up(r, 8)
    n_rows_tile = t_tile + r8                  # rows per strip (covers t_tile + r - 1)
    n_rows_total = t_pad + r8                  # rows per batch element (DMA stays in-bounds)
    need = n_rows_total * hop
    xp = jnp.pad(xp, ((0, 0), (0, need - Lp)))               # zero tail: padded frames -> mel>=0
    xp_rows = xp.reshape(B * n_rows_total, hop)              # hop-strided rows, NO duplication

    w3 = jnp.asarray(w3_np).astype(compute_dtype)            # bf16 DFT matmul on MXU
    fb2 = jnp.asarray(fb2_np)                                # mel matmul + log stay f32

    kernel = _make_logmel_kernel(
        t_tile=t_tile, n_rows_tile=n_rows_tile, n_rows_total=n_rows_total,
        hop=hop, r=r, compute_dtype=compute_dtype)

    out = pl.pallas_call(
        kernel,
        out_shape=jax.ShapeDtypeStruct((B, n_mels_pad, t_pad), jnp.float32),
        grid_spec=pltpu.PrefetchScalarGridSpec(
            num_scalar_prefetch=0,
            grid=(B, n_tiles),
            in_specs=[
                pl.BlockSpec(memory_space=pl.ANY),                    # waveform rows (HBM)
                pl.BlockSpec((r, k2p, hop), lambda b, t: (0, 0, 0)),  # resident DFT basis
                pl.BlockSpec((n_mels_pad, k2p), lambda b, t: (0, 0)), # resident mel fbank
            ],
            out_specs=pl.BlockSpec((1, n_mels_pad, t_tile), lambda b, t: (b, 0, t)),
            scratch_shapes=[
                pltpu.VMEM((n_rows_tile, hop), jnp.float32),          # sample strip
                pltpu.SemaphoreType.DMA,
            ],
        ),
        compiler_params=pltpu.CompilerParams(
            dimension_semantics=("parallel", "parallel")),
    )(xp_rows, w3, fb2)

    # (B, n_mels_pad, t_pad) with time on lanes; drop zero filters / padded time.
    # TODO(synk): let callers accept the padded (n_mels_pad, t_pad) layout to avoid
    # this wrapper-side HBM copy.
    return out[:, :n_mels, :T]


# ------------------------------ pure-JAX reference ------------------------------

def _reference(x, *, sample_rate, n_fft, n_mels, win_length, hop_length,
               compute_dtype=jnp.float32):
    hop = hop_length
    w3_np, fb2_np = _fused_bases(n_fft, win_length, n_mels, sample_rate, hop)
    r, k2p, _ = w3_np.shape
    w2d = w3_np.transpose(1, 0, 2).reshape(k2p, r * hop)[:, :n_fft]   # valid columns only

    pad = n_fft // 2
    xp = jnp.pad(x.astype(jnp.float32), ((0, 0), (pad, pad)), mode="reflect")
    Lp = xp.shape[-1]
    T = 1 + (Lp - n_fft) // hop
    idx = jnp.arange(n_fft)[:, None] + hop * jnp.arange(T)[None, :]   # (n_fft, T)
    frames = xp[:, idx]                                               # (B, n_fft, T)

    f = frames.astype(compute_dtype)
    w = jnp.asarray(w2d).astype(compute_dtype)
    fb2 = jnp.asarray(fb2_np)
    s = jnp.einsum("kn,bnt->bkt", w, f,
                   preferred_element_type=jnp.float32,
                   precision=jax.lax.Precision.HIGHEST)
    mel = jnp.einsum("mk,bkt->bmt", fb2, s * s,
                     preferred_element_type=jnp.float32,
                     precision=jax.lax.Precision.HIGHEST)
    return jnp.log(mel + 1e-12)[:, :n_mels, :]


if __name__ == "__main__":
    exp_args = dict(sample_rate=16000, n_fft=64, n_mels=16,
                    win_length=64, hop_length=16)
    key = jax.random.PRNGKey(0)
    B, L = 2, 256
    x = jax.random.normal(key, (B, L), dtype=jnp.float32)
    T = 1 + L // exp_args["hop_length"]

    # Fast path (bf16 MXU matmuls, f32 accumulation) and "exact" f32 path.
    y_bf16 = log_mel_spec(x, **exp_args, compute_dtype=jnp.bfloat16)
    y_f32 = log_mel_spec(x, **exp_args, compute_dtype=jnp.float32)
    jax.block_until_ready((y_bf16, y_f32))

    ref_f32 = _reference(x, **exp_args, compute_dtype=jnp.float32)
    ref_bf16 = _reference(x, **exp_args, compute_dtype=jnp.bfloat16)

    assert y_bf16.shape == (B, exp_args["n_mels"], T)
    assert y_f32.shape == (B, exp_args["n_mels"], T)

    y_f32_np = np.asarray(y_f32)
    y_bf16_np = np.asarray(y_bf16)
    ref_f32_np = np.asarray(ref_f32)
    ref_bf16_np = np.asarray(ref_bf16)

    # f32 kernel vs f32 reference (kernel matmuls use default TPU f32 precision,
    # reference uses HIGHEST -> tolerance covers the multi-pass difference).
    assert np.allclose(y_f32_np, ref_f32_np, rtol=2e-2, atol=2e-2), \
        float(np.max(np.abs(y_f32_np - ref_f32_np)))
    # bf16 kernel vs precision-matched reference (same bf16-rounded inputs/basis).
    assert np.allclose(y_bf16_np, ref_bf16_np, rtol=2e-2, atol=2e-2), \
        float(np.max(np.abs(y_bf16_np - ref_bf16_np)))
    # bf16 kernel vs full-precision reference, compared in the linear mel-power
    # domain so the check isn't amplified by log() near spectral nulls.
    mel_b, mel_r = np.exp(y_bf16_np), np.exp(ref_f32_np)
    assert np.allclose(mel_b, mel_r, rtol=5e-2, atol=5e-2 * float(mel_r.mean()))

    print("KERNEL_OK")
</pallas_src>

<mosaic_0001>
module attributes {stable_mosaic.version = 11 : i64} {
  func.func @kernel(%arg0: i32, %arg1: i32, %arg2: memref<272x16xf32, #tpu.memory_space<any>>, %arg3: memref<4x80x16xbf16, #tpu.memory_space<vmem>>, %arg4: memref<16x80xf32, #tpu.memory_space<vmem>>, %arg5: memref<1x16x128xf32, #tpu.memory_space<vmem>>, %arg6: memref<136x16xf32, #tpu.memory_space<vmem>>, %arg7: memref<!tpu.dma_semaphore, #tpu.memory_space<semaphore_mem>>) attributes {dimension_semantics = [#tpu.dimension_semantics<parallel>, #tpu.dimension_semantics<parallel>], iteration_bounds = array<i64: 2, 1>, scalar_prefetch = 0 : i64, scratch_operands = 2 : i64, tpu.core_type = #tpu.core_type<tc>, window_params = [{}, {pipeline_mode = #tpu.pipeline_mode<synchronous>, transform_indices = @transform_1, window_bounds = array<i64: 4, 80, 16>}, {pipeline_mode = #tpu.pipeline_mode<synchronous>, transform_indices = @transform_2, window_bounds = array<i64: 16, 80>}, {transform_indices = @transform_3, window_bounds = array<i64: 1, 16, 128>}]} {
    %c136_i32 = arith.constant 136 : i32
    %0 = arith.muli %arg0, %c136_i32 : i32
    %c128_i32 = arith.constant 128 : i32
    %1 = arith.muli %arg1, %c128_i32 : i32
    %2 = arith.addi %0, %1 : i32
    %3 = tpu.assume_multiple %2, 8 : i32
    %c0_i32 = arith.constant 0 : i32
    %4 = tpu.memref_slice %arg2[%3, %c0_i32] : memref<272x16xf32, #tpu.memory_space<any>> -> memref<136x16xf32, #tpu.memory_space<any>>
    tpu.enqueue_dma source(%4 : memref<136x16xf32, #tpu.memory_space<any>>) target(%arg6 : memref<136x16xf32, #tpu.memory_space<vmem>>) target_semaphore(%arg7 : memref<!tpu.dma_semaphore, #tpu.memory_space<semaphore_mem>>)
    %c0_i32_0 = arith.constant 0 : i32
    %5 = tpu.memref_slice %arg2[%3, %c0_i32_0] : memref<272x16xf32, #tpu.memory_space<any>> -> memref<136x16xf32, #tpu.memory_space<any>>
    tpu.wait_dma2 semaphore(%arg7 : memref<!tpu.dma_semaphore, #tpu.memory_space<semaphore_mem>>) src(%5 : memref<136x16xf32, #tpu.memory_space<any>>) dst(%arg6 : memref<136x16xf32, #tpu.memory_space<vmem>>)
    %c0 = arith.constant 0 : index
    %c0_1 = arith.constant 0 : index
    %6 = vector.load %arg6[%c0, %c0_1] : memref<136x16xf32, #tpu.memory_space<vmem>>, vector<128x16xf32>
    %7 = arith.truncf %6 : vector<128x16xf32> to vector<128x16xbf16>
    %c0_2 = arith.constant 0 : index
    %c0_3 = arith.constant 0 : index
    %c0_4 = arith.constant 0 : index
    %8 = vector.load %arg3[%c0_2, %c0_3, %c0_4] : memref<4x80x16xbf16, #tpu.memory_space<vmem>>, vector<1x80x16xbf16>
    %9 = vector.shape_cast %8 : vector<1x80x16xbf16> to vector<80x16xbf16>
    %cst = arith.constant dense<0.000000e+00> : vector<80x128xf32>
    %10 = tpu.matmul %9, %7, %cst {dimension_numbers = #tpu.dot_dimension_numbers<[1], [1], [0], [0], [0, 0, 1, 0], [], []>} : vector<80x16xbf16>, vector<128x16xbf16>, vector<80x128xf32> -> vector<80x128xf32>
    %c1 = arith.constant 1 : index
    %c0_5 = arith.constant 0 : index
    %11 = vector.load %arg6[%c1, %c0_5] : memref<136x16xf32, #tpu.memory_space<vmem>>, vector<128x16xf32>
    %12 = arith.truncf %11 : vector<128x16xf32> to vector<128x16xbf16>
    %c1_6 = arith.constant 1 : index
    %c0_7 = arith.constant 0 : index
    %c0_8 = arith.constant 0 : index
    %13 = vector.load %arg3[%c1_6, %c0_7, %c0_8] : memref<4x80x16xbf16, #tpu.memory_space<vmem>>, vector<1x80x16xbf16>
    %14 = vector.shape_cast %13 : vector<1x80x16xbf16> to vector<80x16xbf16>
    %cst_9 = arith.constant dense<0.000000e+00> : vector<80x128xf32>
    %15 = tpu.matmul %14, %12, %cst_9 {dimension_numbers = #tpu.dot_dimension_numbers<[1], [1], [0], [0], [0, 0, 1, 0], [], []>} : vector<80x16xbf16>, vector<128x16xbf16>, vector<80x128xf32> -> vector<80x128xf32>
    %16 = arith.addf %10, %15 : vector<80x128xf32>
    %c2 = arith.constant 2 : index
    %c0_10 = arith.constant 0 : index
    %17 = vector.load %arg6[%c2, %c0_10] : memref<136x16xf32, #tpu.memory_space<vmem>>, vector<128x16xf32>
    %18 = arith.truncf %17 : vector<128x16xf32> to vector<128x16xbf16>
    %c2_11 = arith.constant 2 : index
    %c0_12 = arith.constant 0 : index
    %c0_13 = arith.constant 0 : index
    %19 = vector.load %arg3[%c2_11, %c0_12, %c0_13] : memref<4x80x16xbf16, #tpu.memory_space<vmem>>, vector<1x80x16xbf16>
    %20 = vector.shape_cast %19 : vector<1x80x16xbf16> to vector<80x16xbf16>
    %cst_14 = arith.constant dense<0.000000e+00> : vector<80x128xf32>
    %21 = tpu.matmul %20, %18, %cst_14 {dimension_numbers = #tpu.dot_dimension_numbers<[1], [1], [0], [0], [0, 0, 1, 0], [], []>} : vector<80x16xbf16>, vector<128x16xbf16>, vector<80x128xf32> -> vector<80x128xf32>
    %22 = arith.addf %16, %21 : vector<80x128xf32>
    %c3 = arith.constant 3 : index
    %c0_15 = arith.constant 0 : index
    %23 = vector.load %arg6[%c3, %c0_15] : memref<136x16xf32, #tpu.memory_space<vmem>>, vector<128x16xf32>
    %24 = arith.truncf %23 : vector<128x16xf32> to vector<128x16xbf16>
    %c3_16 = arith.constant 3 : index
    %c0_17 = arith.constant 0 : index
    %c0_18 = arith.constant 0 : index
    %25 = vector.load %arg3[%c3_16, %c0_17, %c0_18] : memref<4x80x16xbf16, #tpu.memory_space<vmem>>, vector<1x80x16xbf16>
    %26 = vector.shape_cast %25 : vector<1x80x16xbf16> to vector<80x16xbf16>
    %cst_19 = arith.constant dense<0.000000e+00> : vector<80x128xf32>
    %27 = tpu.matmul %26, %24, %cst_19 {dimension_numbers = #tpu.dot_dimension_numbers<[1], [1], [0], [0], [0, 0, 1, 0], [], []>} : vector<80x16xbf16>, vector<128x16xbf16>, vector<80x128xf32> -> vector<80x128xf32>
    %28 = arith.addf %22, %27 : vector<80x128xf32>
    %29 = arith.mulf %28, %28 : vector<80x128xf32>
    %c0_20 = arith.constant 0 : index
    %c0_21 = arith.constant 0 : index
    %30 = vector.load %arg4[%c0_20, %c0_21] : memref<16x80xf32, #tpu.memory_space<vmem>>, vector<16x80xf32>
    %cst_22 = arith.constant dense<0.000000e+00> : vector<16x128xf32>
    %31 = tpu.matmul %30, %29, %cst_22 {dimension_numbers = #tpu.dot_dimension_numbers<[1], [0], [0], [1], [0, 0, 1, 1], [], []>} : vector<16x80xf32>, vector<80x128xf32>, vector<16x128xf32> -> vector<16x128xf32>
    %cst_23 = arith.constant 9.99999996E-13 : f32
    %32 = vector.broadcast %cst_23 : f32 to vector<16x128xf32>
    %33 = arith.addf %31, %32 : vector<16x128xf32>
    %34 = math.log %33 : vector<16x128xf32>
    %c0_24 = arith.constant 0 : index
    %c0_25 = arith.constant 0 : index
    %c0_26 = arith.constant 0 : index
    %35 = vector.load %arg5[%c0_24, %c0_25, %c0_26] : memref<1x16x128xf32, #tpu.memory_space<vmem>>, vector<1x16x128xf32>
    %36 = vector.shape_cast %35 : vector<1x16x128xf32> to vector<16x128xf32>
    %37 = vector.shape_cast %34 : vector<16x128xf32> to vector<1x16x128xf32>
    tpu.vector_store %arg5[%c0_24, %c0_25, %c0_26], %37 {strides = array<i32>} : memref<1x16x128xf32, #tpu.memory_space<vmem>>, vector<1x16x128xf32>,
    return
  }
  func.func @transform_1(%arg0: i32, %arg1: i32) -> (i32, i32, i32) {
    %c0_i32 = arith.constant 0 : i32
    %c0_i32_0 = arith.constant 0 : i32
    %c0_i32_1 = arith.constant 0 : i32
    %c0_i32_2 = arith.constant 0 : i32
    return %c0_i32, %c0_i32_0, %c0_i32_1 : i32, i32, i32
  }
  func.func @transform_2(%arg0: i32, %arg1: i32) -> (i32, i32) {
    %c0_i32 = arith.constant 0 : i32
    %c0_i32_0 = arith.constant 0 : i32
    %c0_i32_1 = arith.constant 0 : i32
    return %c0_i32, %c0_i32_0 : i32, i32
  }
  func.func @transform_3(%arg0: i32, %arg1: i32) -> (i32, i32, i32) {
    %c0_i32 = arith.constant 0 : i32
    %c0_i32_0 = arith.constant 0 : i32
    return %arg0, %c0_i32, %arg1 : i32, i32, i32
  }
}

</mosaic_0001>

<llo_original>
// kernel: tpu_custom_call.1
$region0: #{tpu_custom_call.1}
  #allocation0 [shape = 'u32[]', space=smem, size = 0x4, offset = 0x4, fixed_abs, tag = 'smem constant byte address 0x4 - core index']
  #allocation1 [shape = 'u32[144,128]{1,0:T(1,128)}', space=vmem, size = 0x12000, scoped, tag = 'internal scratch']
  #allocation2 [shape = 'f32[136,16]{1,0:T(8,128)}', space=vmem, size = 0x11000, scoped, tag = 'scratch operand']
  #allocation3 [shape = 's32[1]{0}', space=sflag, size = 0x4, scoped, tag = 'scratch operand']
  #allocation6 [shape = 's32[]', space=sflag, size = 0x4, offset = 0, fixed_abs, tag = 'sflag constant byte address 0x0 - dummy sync flag']
  %s0 = inlined_call_operand.vmem [shape: f32[272,16], index: 0, kind: input, shape index: {}]
  %s1 = inlined_call_operand.vmem [shape: bf16[4,80,16], index: 1, kind: input, shape index: {}]
  %s2 = inlined_call_operand.vmem [shape: f32[16,80], index: 2, kind: input, shape index: {}]
  %s3 = inlined_call_operand.hbm [shape: f32[2,16,128], index: 3, kind: output, shape index: {}]
  %s4 = sld [smem:[#allocation0]]
  $region75: #{tpu_custom_call.1} parent=0
    _
  %s6 = ssub.s32 1, %s4
  %s7 = scalar_select 0, %s6, %s4
  $region1: #{tpu_custom_call.1} parent=0
    #allocation4 [shape = 'u8[16384]{0}', space=vmem, size = 0x4000, scoped, tag = 'output window, operand 0']
    #allocation5 [shape = 's32[2]{0}', space=sflag, size = 0x8, scoped, tag = 'scoped memory for tpu_custom_call.1']
    %8 = vsyncpa [#allocation5], 0
    %s9 = scalar_lea.sflag [#allocation5], 1
    %10 = vsyncpa %s9, 0
    loop: start=0, step=1, limit=4
    $region2: #{tpu_custom_call.1} parent=1 // loop_pre_header
      _
    $region3: #{tpu_custom_call.1} parent=1 // loop_header
      %s12 = sphi 0, %s16
      %p13 = scmp.ge.s32.totalorder %s12, 4
      %s19 = sphi 0, %s31
      %s20 = sphi 0, %s27
      %s21 = sphi 0, %s19
      %s22 = sphi 0, %s20
      %s23 = sphi 0, %s21
      %s24 = sphi 0, %s22
      %s32 = sphi 0, %s32
      %s34 = sphi 0, %s32
      %s35 = sphi 0, %s34
      %s49 = sphi 0, %s35
      %s53 = sphi 0, %s53
      %s55 = sphi 0, %s53
      %s56 = sphi 0, %s55
      %s70 = sphi 0, %s56
      %s78 = sphi 0, %s80
      %s81 = sphi 0, %s78
      %s82 = sphi 0, %s81
      %s98 = sphi 0, %s82
    $region4: #{tpu_custom_call.1} parent=1 // loop_header_branch
      %15 = sbr.rel (%p13) target = $region8
    $region5: #{tpu_custom_call.1} parent=1 // loop_body
      %s17 = ssub.s32 %s12, 1
      %s18 = ssub.s32 %s12, 2
      %s25 = sadd.s32 1, %s20
      %p26 = scmp.ge.s32.totalorder %s25, 1
      %s27 = scalar_select %p26, 0, %s25
      %s28 = sadd.s32 1, %s19
      %s29 = scalar_select %p26, %s28, %s19
      %p30 = scmp.ge.s32.totalorder %s29, 2
      %s31 = scalar_select %p30, 0, %s29
      %s33 = sadd.s32 %s32, 1
      %p36 = scmp.eq.s32.totalorder %s12, 1
      %p37 = scmp.ne.s32.totalorder %s32, %s34
      %p38 = scmp.eq.s32.totalorder %s12, 0
      %p39 = por %p37, %p38
      %p40 = scmp.ne.s32.totalorder %s32, %s34
      %p41 = scmp.eq.s32.totalorder %s17, 1
      %p42 = por %p40, %p41
      %p43 = scmp.ne.s32.totalorder %s34, %s35
      %p44 = scmp.eq.s32.totalorder %s17, 0
      %p45 = por %p43, %p44
      %p46 = scmp.ne.s32.totalorder %s34, %s35
      %p47 = scmp.eq.s32.totalorder %s18, 1
      %p48 = por %p46, %p47
      %p50 = scmp.ne.s32.totalorder %s35, %s49
      %p51 = scmp.eq.s32.totalorder %s18, 0
      %p52 = por %p50, %p51
      %s54 = sadd.s32 %s53, 1
      %p57 = scmp.eq.s32.totalorder %s12, 1
      %p58 = scmp.ne.s32.totalorder %s53, %s55
      %p59 = scmp.eq.s32.totalorder %s12, 0
      %p60 = por %p58, %p59
      %p61 = scmp.ne.s32.totalorder %s53, %s55
      %p62 = scmp.eq.s32.totalorder %s17, 1
      %p63 = por %p61, %p62
      %p64 = scmp.ne.s32.totalorder %s55, %s56
      %p65 = scmp.eq.s32.totalorder %s17, 0
      %p66 = por %p64, %p65
      %p67 = scmp.ne.s32.totalorder %s55, %s56
      %p68 = scmp.eq.s32.totalorder %s18, 1
      %p69 = por %p67, %p68
      %p71 = scmp.ne.s32.totalorder %s56, %s70
      %p72 = scmp.eq.s32.totalorder %s18, 0
      %p73 = por %p71, %p72
      %s74 = ssub.s32 %s19, %s31
      %s75 = ssub.s32 %s20, %s27
      %s76 = sor.u32 %s74, %s75
      %p77 = scmp.eq.s32.totalorder %s76, 0
      %s79 = sadd.s32 %s78, 1
      %s80 = scalar_select %p77, %s78, %s79
      %p83 = pneg %p77
      %p84 = scmp.eq.s32.totalorder %s12, 1
      %p85 = por %p83, %p84
      %p86 = scmp.ne.s32.totalorder %s78, %s81
      %p87 = scmp.eq.s32.totalorder %s12, 0
      %p88 = por %p86, %p87
      %p89 = scmp.ne.s32.totalorder %s78, %s81
      %p90 = scmp.eq.s32.totalorder %s17, 1
      %p91 = por %p89, %p90
      %p92 = scmp.ne.s32.totalorder %s81, %s82
      %p93 = scmp.eq.s32.totalorder %s17, 0
      %p94 = por %p92, %p93
      %p95 = scmp.ne.s32.totalorder %s81, %s82
      %p96 = scmp.eq.s32.totalorder %s18, 1
      %p97 = por %p95, %p96
      %p99 = scmp.ne.s32.totalorder %s82, %s98
      %p100 = scmp.eq.s32.totalorder %s18, 0
      %p101 = por %p99, %p100
      %p102 = scmp.le.s32.totalorder 1, %s12
      %p103 = scmp.lt.s32.totalorder %s12, 3
      %p104 = pnand %p102, %p103
      %p105 = pneg %p104
      // Predicated region
      $region9: #{tpu_custom_call.1} parent=5 // pred_check
        _
      $region10: #{tpu_custom_call.1} parent=5 // pred_check_branch
        %107 = sbr.rel (%p104) target = $region12
      $region11: #{tpu_custom_call.1} parent=5 // pred_region
        %s108 = ssub.s32 %s12, 1
        // Predicated region
        $region13: #{tpu_custom_call.1} parent=11 // pred_check
          %p109 = pneg %p45
        $region14: #{tpu_custom_call.1} parent=11 // pred_check_branch
          %111 = sbr.rel (%p109) target = $region16
        $region15: #{tpu_custom_call.1} parent=11 // pred_region
          _
        $region16: #{tpu_custom_call.1} parent=11 // pred_fallthru
          _
        // Predicated region
        $region17: #{tpu_custom_call.1} parent=11 // pred_check
          %p112 = pneg %p66
        $region18: #{tpu_custom_call.1} parent=11 // pred_check_branch
          %114 = sbr.rel (%p112) target = $region20
        $region19: #{tpu_custom_call.1} parent=11 // pred_region
          _
        $region20: #{tpu_custom_call.1} parent=11 // pred_fallthru
          _
      $region12: #{tpu_custom_call.1} parent=5 // pred_fallthru
        _
      %p115 = scmp.lt.s32.totalorder %s12, 2
      // Predicated region
      $region21: #{tpu_custom_call.1} parent=5 // pred_check
        %p116 = pneg %p115
      $region22: #{tpu_custom_call.1} parent=5 // pred_check_branch
        %118 = sbr.rel (%p116) target = $region24
      $region23: #{tpu_custom_call.1} parent=5 // pred_region
        _
      $region24: #{tpu_custom_call.1} parent=5 // pred_fallthru
        _
      %p119 = scmp.le.s32.totalorder 1, %s12
      %p120 = scmp.lt.s32.totalorder %s12, 3
      %p121 = pnand %p119, %p120
      %p122 = pneg %p121
      // Predicated region
      $region25: #{tpu_custom_call.1} parent=5 // pred_check
        _
      $region26: #{tpu_custom_call.1} parent=5 // pred_check_branch
        %124 = sbr.rel (%p121) target = $region28
      $region27: #{tpu_custom_call.1} parent=5 // pred_region
        %s125 = ssub.s32 %s12, 1
        %p126 = pneg %p45
        %p127 = pneg %p42
        %p128 = pneg %p66
        %p129 = pneg %p63
        %p130 = pneg %p94
        %p131 = pneg %p91
        %s132 = sand.u32 %s81, 1
        %s133 = scalar_lea.sflag [#allocation5], %s132
        %s134 = sand.u32 %s81, 1
        %s135 = smul.addr %s134, 16
        %s136 = scalar_lea.vmem [#allocation4], %s135
        %s138 = smul.u32 %s21, 136
        %s139 = smul.u32 %s22, 128
        %s140 = sadd.s32 %s138, %s139
        %s141 = scalar_lea.vmem %s0, %s140
        %p143 = scmp.lt.u32.totalorder 136, 8
        %p144 = pneg %p143
        // Predicated region
        $region29: #{tpu_custom_call.1} parent=27 // pred_check
          _
        $region30: #{tpu_custom_call.1} parent=27 // pred_check_branch
          %146 = sbr.rel (%p143) target = $region32
        $region31: #{tpu_custom_call.1} parent=27 // pred_region
          %s161 = sand.u32 136, 7
          %p162 = scmp.eq.s32.totalorder %s161, 0
          // Predicated region
          $region44: #{tpu_custom_call.1} parent=31 // pred_check
            %p163 = pneg %p162
          $region45: #{tpu_custom_call.1} parent=31 // pred_check_branch
            %165 = sbr.rel (%p163) target = $region47
          $region46: #{tpu_custom_call.1} parent=31 // pred_region
            loop: start=0, step=1, limit=1
            $region48: #{tpu_custom_call.1} parent=46 // loop_pre_header
              _
            $region49: #{tpu_custom_call.1} parent=46 // loop_header
              %s167 = sphi 0, %s171
              %p168 = scmp.ge.s32.totalorder %s167, 1
              %s172 = sphi %s141, %s141
              %s173 = sphi [#allocation2], [#allocation2]
            $region50: #{tpu_custom_call.1} parent=46 // loop_header_branch
              %170 = sbr.rel (%p168) target = $region54
            $region51: #{tpu_custom_call.1} parent=46 // loop_body
              %v174 = vld [vmem:[%s172] sm:$0xff]
              %175 = vst [vmem:[%s173] sm:$0xff] %v174
              %v176 = vld [vmem:[%s172 + $0x8] sm:$0xff]
              %177 = vst [vmem:[%s173 + $0x8] sm:$0xff] %v176
              %v178 = vld [vmem:[%s172 + $0x10] sm:$0xff]
              %179 = vst [vmem:[%s173 + $0x10] sm:$0xff] %v178
              %v180 = vld [vmem:[%s172 + $0x18] sm:$0xff]
              %181 = vst [vmem:[%s173 + $0x18] sm:$0xff] %v180
              %v182 = vld [vmem:[%s172 + $0x20] sm:$0xff]
              %183 = vst [vmem:[%s173 + $0x20] sm:$0xff] %v182
              %v184 = vld [vmem:[%s172 + $0x28] sm:$0xff]
              %185 = vst [vmem:[%s173 + $0x28] sm:$0xff] %v184
              %v186 = vld [vmem:[%s172 + $0x30] sm:$0xff]
              %187 = vst [vmem:[%s173 + $0x30] sm:$0xff] %v186
              %v188 = vld [vmem:[%s172 + $0x38] sm:$0xff]
              %189 = vst [vmem:[%s173 + $0x38] sm:$0xff] %v188
              %v190 = vld [vmem:[%s172 + $0x40] sm:$0xff]
              %191 = vst [vmem:[%s173 + $0x40] sm:$0xff] %v190
              %v192 = vld [vmem:[%s172 + $0x48] sm:$0xff]
              %193 = vst [vmem:[%s173 + $0x48] sm:$0xff] %v192
              %v194 = vld [vmem:[%s172 + $0x50] sm:$0xff]
              %195 = vst [vmem:[%s173 + $0x50] sm:$0xff] %v194
              %v196 = vld [vmem:[%s172 + $0x58] sm:$0xff]
              %197 = vst [vmem:[%s173 + $0x58] sm:$0xff] %v196
              %v198 = vld [vmem:[%s172 + $0x60] sm:$0xff]
              %199 = vst [vmem:[%s173 + $0x60] sm:$0xff] %v198
              %v200 = vld [vmem:[%s172 + $0x68] sm:$0xff]
              %201 = vst [vmem:[%s173 + $0x68] sm:$0xff] %v200
              %v202 = vld [vmem:[%s172 + $0x70] sm:$0xff]
              %203 = vst [vmem:[%s173 + $0x70] sm:$0xff] %v202
              %v204 = vld [vmem:[%s172 + $0x78] sm:$0xff]
              %205 = vst [vmem:[%s173 + $0x78] sm:$0xff] %v204
              %v206 = vld [vmem:[%s172 + $0x80] sm:$0xff]
              %207 = vst [vmem:[%s173 + $0x80] sm:$0xff] %v206
            $region52: #{tpu_custom_call.1} parent=46 // loop_footer
              %s171 = sadd.s32 1, %s167
            $region53: #{tpu_custom_call.1} parent=46 // loop_footer_branch
              %166 = sbr.rel target = $region49
            $region54: #{tpu_custom_call.1} parent=46 // loop_exit
              _
          $region47: #{tpu_custom_call.1} parent=31 // pred_fallthru
            _
          %p208 = pneg %p162
          // Predicated region
          $region55: #{tpu_custom_call.1} parent=31 // pred_check
            _
          $region56: #{tpu_custom_call.1} parent=31 // pred_check_branch
            %210 = sbr.rel (%p162) target = $region58
          $region57: #{tpu_custom_call.1} parent=31 // pred_region
            %s211 = sand.u32 136, 7
          $region58: #{tpu_custom_call.1} parent=31 // pred_fallthru
            _
        $region32: #{tpu_custom_call.1} parent=27 // pred_fallthru
          _
        // Predicated region
        $region33: #{tpu_custom_call.1} parent=27 // pred_check
          %p147 = pneg %p143
        $region34: #{tpu_custom_call.1} parent=27 // pred_check_branch
          %149 = sbr.rel (%p147) target = $region36
        $region35: #{tpu_custom_call.1} parent=27 // pred_region
          %s150 = sshllo.u32 0, 136
          loop: start=0, step=1, limit=1
          $region37: #{tpu_custom_call.1} parent=35 // loop_pre_header
            _
          $region38: #{tpu_custom_call.1} parent=35 // loop_header
            %s152 = sphi 0, %s156
            %p153 = scmp.ge.s32.totalorder %s152, 1
            %s157 = sphi %s141, %s141
            %s158 = sphi [#allocation2], [#allocation2]
          $region39: #{tpu_custom_call.1} parent=35 // loop_header_branch
            %155 = sbr.rel (%p153) target = $region43
          $region40: #{tpu_custom_call.1} parent=35 // loop_body
            %v159 = vld [vmem:[%s157] sm:%s150]
            %160 = vst [vmem:[%s158] sm:%s150] %v159
          $region41: #{tpu_custom_call.1} parent=35 // loop_footer
            %s156 = sadd.s32 1, %s152
          $region42: #{tpu_custom_call.1} parent=35 // loop_footer_branch
            %151 = sbr.rel target = $region38
          $region43: #{tpu_custom_call.1} parent=35 // loop_exit
            _
        $region36: #{tpu_custom_call.1} parent=27 // pred_fallthru
          _
        // Predicated region
        $region59: #{tpu_custom_call.1} parent=27 // pred_check
          _
        $region60: #{tpu_custom_call.1} parent=27 // pred_check_branch
          %214 = sbr.rel (0) target = $region62
        $region61: #{tpu_custom_call.1} parent=27 // pred_region
          %215 = vsyncadd [#allocation3], 2176
        $region62: #{tpu_custom_call.1} parent=27 // pred_fallthru
          _
        %s216 = smul.u32 136, 1
        %s217 = sshll.u32 %s216, 4
        %218 = dma.done [#allocation3], %s217
        %v219 = vld [vmem:[#allocation2] sm:$0xff]
        %v220 = vld [vmem:[#allocation2 + $0x8] sm:$0xff]
        %v221 = vld [vmem:[#allocation2 + $0x10] sm:$0xff]
        %v222 = vld [vmem:[#allocation2 + $0x18] sm:$0xff]
        %v223 = vld [vmem:[#allocation2 + $0x20] sm:$0xff]
        %v224 = vld [vmem:[#allocation2 + $0x28] sm:$0xff]
        %v225 = vld [vmem:[#allocation2 + $0x30] sm:$0xff]
        %v226 = vld [vmem:[#allocation2 + $0x38] sm:$0xff]
        %v227 = vld [vmem:[#allocation2 + $0x40] sm:$0xff]
        %v228 = vld [vmem:[#allocation2 + $0x48] sm:$0xff]
        %v229 = vld [vmem:[#allocation2 + $0x50] sm:$0xff]
        %v230 = vld [vmem:[#allocation2 + $0x58] sm:$0xff]
        %v231 = vld [vmem:[#allocation2 + $0x60] sm:$0xff]
        %v232 = vld [vmem:[#allocation2 + $0x68] sm:$0xff]
        %v233 = vld [vmem:[#allocation2 + $0x70] sm:$0xff]
        %v234 = vld [vmem:[#allocation2 + $0x78] sm:$0xff]
        %v235 = vpack.c.bf16 %v220, %v219
        %v236 = vpack.c.bf16 %v222, %v221
        %v237 = vpack.c.bf16 %v224, %v223
        %v238 = vpack.c.bf16 %v226, %v225
        %v239 = vpack.c.bf16 %v228, %v227
        %v240 = vpack.c.bf16 %v230, %v229
        %v241 = vpack.c.bf16 %v232, %v231
        %v242 = vpack.c.bf16 %v234, %v233
        %v243 = vld [vmem:[%s1] sm:$0xf]
        %v244 = vld [vmem:[%s1 + $0x4] sm:$0xf]
        %v245 = vld [vmem:[%s1 + $0x8] sm:$0xf]
        %v246 = vld [vmem:[%s1 + $0xc] sm:$0xf]
        %v247 = vld [vmem:[%s1 + $0x10] sm:$0xf]
        %v248 = vld [vmem:[%s1 + $0x14] sm:$0xf]
        %v249 = vld [vmem:[%s1 + $0x18] sm:$0xf]
        %v250 = vld [vmem:[%s1 + $0x1c] sm:$0xf]
        %v251 = vld [vmem:[%s1 + $0x20] sm:$0xf]
        %v252 = vld [vmem:[%s1 + $0x24] sm:$0xf]
        %v253 = vld [vmem:[#allocation2 + $0x1] sm:$0xff]
        %v254 = vld [vmem:[#allocation2 + $0x9] sm:$0xff]
        %v255 = vld [vmem:[#allocation2 + $0x11] sm:$0xff]
        %v256 = vld [vmem:[#allocation2 + $0x19] sm:$0xff]
        %v257 = vld [vmem:[#allocation2 + $0x21] sm:$0xff]
        %v258 = vld [vmem:[#allocation2 + $0x29] sm:$0xff]
        %v259 = vld [vmem:[#allocation2 + $0x31] sm:$0xff]
        %v260 = vld [vmem:[#allocation2 + $0x39] sm:$0xff]
        %v261 = vld [vmem:[#allocation2 + $0x41] sm:$0xff]
        %v262 = vld [vmem:[#allocation2 + $0x49] sm:$0xff]
        %v263 = vld [vmem:[#allocation2 + $0x51] sm:$0xff]
        %v264 = vld [vmem:[#allocation2 + $0x59] sm:$0xff]
        %v265 = vld [vmem:[#allocation2 + $0x61] sm:$0xff]
        %v266 = vld [vmem:[#allocation2 + $0x69] sm:$0xff]
        %v267 = vld [vmem:[#allocation2 + $0x71] sm:$0xff]
        %v268 = vld [vmem:[#allocation2 + $0x79] sm:$0xff]
        %v269 = vpack.c.bf16 %v254, %v253
        %v270 = vpack.c.bf16 %v256, %v255
        %v271 = vpack.c.bf16 %v258, %v257
        %v272 = vpack.c.bf16 %v260, %v259
        %v273 = vpack.c.bf16 %v262, %v261
        %v274 = vpack.c.bf16 %v264, %v263
        %v275 = vpack.c.bf16 %v266, %v265
        %v276 = vpack.c.bf16 %v268, %v267
        %s277 = scalar_lea.vmem %s1, 40
        %v278 = vld [vmem:[%s277] sm:$0xf]
        %v279 = vld [vmem:[%s277 + $0x4] sm:$0xf]
        %v280 = vld [vmem:[%s277 + $0x8] sm:$0xf]
        %v281 = vld [vmem:[%s277 + $0xc] sm:$0xf]
        %v282 = vld [vmem:[%s277 + $0x10] sm:$0xf]
        %v283 = vld [vmem:[%s277 + $0x14] sm:$0xf]
        %v284 = vld [vmem:[%s277 + $0x18] sm:$0xf]
        %v285 = vld [vmem:[%s277 + $0x1c] sm:$0xf]
        %v286 = vld [vmem:[%s277 + $0x20] sm:$0xf]
        %v287 = vld [vmem:[%s277 + $0x24] sm:$0xf]
        %v298 = vunpack.c.l.b16 %v278
        %v299 = vunpack.c.l.b16 %v279
        %v300 = vunpack.c.l.b16 %v280
        %v301 = vunpack.c.l.b16 %v281
        %v302 = vunpack.c.l.b16 %v282
        %v303 = vunpack.c.l.b16 %v283
        %v304 = vunpack.c.l.b16 %v284
        %v305 = vunpack.c.l.b16 %v285
        %v306 = vunpack.c.l.b16 %v286
        %v307 = vunpack.c.l.b16 %v287
        %v308 = vpack.c.b16 %v299, %v298
        %v309 = vpack.c.b16 %v301, %v300
        %v310 = vpack.c.b16 %v303, %v302
        %v311 = vpack.c.b16 %v305, %v304
        %v312 = vpack.c.b16 %v307, %v306
        %vm313 = vcmask 130048
        %v315 = vsel %vm313, %v308, 0
        %v318 = vsel %vm313, %v309, 0
        %v321 = vsel %vm313, %v310, 0
        %v324 = vsel %vm313, %v311, 0
        %v327 = vsel %vm313, %v312, 0
        %v330 = vsel %vm313, %v269, 0
        %v333 = vsel %vm313, %v270, 0
        %v336 = vsel %vm313, %v271, 0
        %v339 = vsel %vm313, %v272, 0
        %v342 = vsel %vm313, %v273, 0
        %v345 = vsel %vm313, %v274, 0
        %v348 = vsel %vm313, %v275, 0
        %v351 = vsel %vm313, %v276, 0
        %353 = vmatprep.subr.bf16.mxu0 0
        %354 = vmatpush1.bf16.xpose.msra.mxu0 %v330
        %355 = vmatprep.subr.bf16.mxu0 0
        %356 = vmatpush1.bf16.xpose.msra.mxu0 %v333
        %357 = vmatprep.subr.bf16.mxu0 0
        %358 = vmatpush1.bf16.xpose.msra.mxu0 %v336
        %359 = vmatprep.subr.bf16.mxu0 0
        %360 = vmatpush1.bf16.xpose.msra.mxu0 %v339
        %361 = vmatprep.subr.bf16.mxu0 0
        %362 = vmatpush1.bf16.xpose.msra.mxu0 %v342
        %363 = vmatprep.subr.bf16.mxu0 0
        %364 = vmatpush1.bf16.xpose.msra.mxu0 %v345
        %365 = vmatprep.subr.bf16.mxu0 0
        %366 = vmatpush1.bf16.xpose.msra.mxu0 %v348
        %367 = vmatprep.subr.bf16.mxu0 0
        %368 = vmatpush1.bf16.xpose.msra.mxu0 %v351
        %369 = vmatprep.subr.bf16.mxu0 0
        %370 = vmatpush1.bf16.xpose.msra.mxu0 0
        %371 = vmatprep.subr.bf16.mxu0 0
        %372 = vmatpush1.bf16.xpose.msra.mxu0 0
        %373 = vmatprep.subr.bf16.mxu0 0
        %374 = vmatpush1.bf16.xpose.msra.mxu0 0
        %375 = vmatprep.subr.bf16.mxu0 0
        %376 = vmatpush1.bf16.xpose.msra.mxu0 0
        %377 = vmatprep.subr.bf16.mxu0 0
        %378 = vmatpush1.bf16.xpose.msra.mxu0 0
        %379 = vmatprep.subr.bf16.mxu0 0
        %380 = vmatpush1.bf16.xpose.msra.mxu0 0
        %381 = vmatprep.subr.bf16.mxu0 0
        %382 = vmatpush1.bf16.xpose.msra.mxu0 0
        %383 = vmatprep.subr.bf16.mxu0 0
        %384 = vmatpush1.bf16.xpose.msra.mxu0 0
        %385 = vmatprep.mubr.bf16.mxu0 0
        %386 = vmatmul.mubr.bf16.gmra.mrb[0].mxu0 %v315
        %v387 = vpop.f32.mrb[0].mxu0
        %v388 = vadd.f32 0.0, %v387
        %v389 = vpop.f32.mrb[0].mxu0
        %v390 = vpop.f32.mrb[0].mxu0
        %v391 = vadd.f32 0.0, %v390
        %v392 = vpop.f32.mrb[0].mxu0
        %393 = vmatprep.mubr.bf16.mxu0 0
        %394 = vmatmul.mubr.bf16.gmra.mrb[0].mxu0 %v318
        %v395 = vpop.f32.mrb[0].mxu0
        %v396 = vadd.f32 0.0, %v395
        %v397 = vpop.f32.mrb[0].mxu0
        %v398 = vpop.f32.mrb[0].mxu0
        %v399 = vadd.f32 0.0, %v398
        %v400 = vpop.f32.mrb[0].mxu0
        %401 = vmatprep.mubr.bf16.mxu0 0
        %402 = vmatmul.mubr.bf16.gmra.mrb[0].mxu0 %v321
        %v403 = vpop.f32.mrb[0].mxu0
        %v404 = vadd.f32 0.0, %v403
        %v405 = vpop.f32.mrb[0].mxu0
        %v406 = vpop.f32.mrb[0].mxu0
        %v407 = vadd.f32 0.0, %v406
        %v408 = vpop.f32.mrb[0].mxu0
        %409 = vmatprep.mubr.bf16.mxu0 0
        %410 = vmatmul.mubr.bf16.gmra.mrb[0].mxu0 %v324
        %v411 = vpop.f32.mrb[0].mxu0
        %v412 = vadd.f32 0.0, %v411
        %v413 = vpop.f32.mrb[0].mxu0
        %v414 = vpop.f32.mrb[0].mxu0
        %v415 = vadd.f32 0.0, %v414
        %v416 = vpop.f32.mrb[0].mxu0
        %417 = vmatprep.mubr.bf16.mxu0 0
        %418 = vmatmul.mubr.bf16.gmra.mrb[0].mxu0 %v327
        %v419 = vpop.f32.mrb[0].mxu0
        %v420 = vadd.f32 0.0, %v419
        %v421 = vpop.f32.mrb[0].mxu0
        %v422 = vpop.f32.mrb[0].mxu0
        %v423 = vadd.f32 0.0, %v422
        %v424 = vpop.f32.mrb[0].mxu0
        %425 = vdwg.mxu0
        %v436 = vunpack.c.l.b16 %v243
        %v437 = vunpack.c.l.b16 %v244
        %v438 = vunpack.c.l.b16 %v245
        %v439 = vunpack.c.l.b16 %v246
        %v440 = vunpack.c.l.b16 %v247
        %v441 = vunpack.c.l.b16 %v248
        %v442 = vunpack.c.l.b16 %v249
        %v443 = vunpack.c.l.b16 %v250
        %v444 = vunpack.c.l.b16 %v251
        %v445 = vunpack.c.l.b16 %v252
        %v446 = vpack.c.b16 %v437, %v436
        %v447 = vpack.c.b16 %v439, %v438
        %v448 = vpack.c.b16 %v441, %v440
        %v449 = vpack.c.b16 %v443, %v442
        %v450 = vpack.c.b16 %v445, %v444
        %v452 = vsel %vm313, %v446, 0
        %v455 = vsel %vm313, %v447, 0
        %v458 = vsel %vm313, %v448, 0
        %v461 = vsel %vm313, %v449, 0
        %v464 = vsel %vm313, %v450, 0
        %v467 = vsel %vm313, %v235, 0
        %v470 = vsel %vm313, %v236, 0
        %v473 = vsel %vm313, %v237, 0
        %v476 = vsel %vm313, %v238, 0
        %v479 = vsel %vm313, %v239, 0
        %v482 = vsel %vm313, %v240, 0
        %v485 = vsel %vm313, %v241, 0
        %v488 = vsel %vm313, %v242, 0
        %490 = vmatprep.subr.bf16.mxu0 0
        %491 = vmatpush1.bf16.xpose.msra.mxu0 %v467
        %492 = vmatprep.subr.bf16.mxu0 0
        %493 = vmatpush1.bf16.xpose.msra.mxu0 %v470
        %494 = vmatprep.subr.bf16.mxu0 0
        %495 = vmatpush1.bf16.xpose.msra.mxu0 %v473
        %496 = vmatprep.subr.bf16.mxu0 0
        %497 = vmatpush1.bf16.xpose.msra.mxu0 %v476
        %498 = vmatprep.subr.bf16.mxu0 0
        %499 = vmatpush1.bf16.xpose.msra.mxu0 %v479
        %500 = vmatprep.subr.bf16.mxu0 0
        %501 = vmatpush1.bf16.xpose.msra.mxu0 %v482
        %502 = vmatprep.subr.bf16.mxu0 0
        %503 = vmatpush1.bf16.xpose.msra.mxu0 %v485
        %504 = vmatprep.subr.bf16.mxu0 0
        %505 = vmatpush1.bf16.xpose.msra.mxu0 %v488
        %506 = vmatprep.subr.bf16.mxu0 0
        %507 = vmatpush1.bf16.xpose.msra.mxu0 0
        %508 = vmatprep.subr.bf16.mxu0 0
        %509 = vmatpush1.bf16.xpose.msra.mxu0 0
        %510 = vmatprep.subr.bf16.mxu0 0
        %511 = vmatpush1.bf16.xpose.msra.mxu0 0
        %512 = vmatprep.subr.bf16.mxu0 0
        %513 = vmatpush1.bf16.xpose.msra.mxu0 0
        %514 = vmatprep.subr.bf16.mxu0 0
        %515 = vmatpush1.bf16.xpose.msra.mxu0 0
        %516 = vmatprep.subr.bf16.mxu0 0
        %517 = vmatpush1.bf16.xpose.msra.mxu0 0
        %518 = vmatprep.subr.bf16.mxu0 0
        %519 = vmatpush1.bf16.xpose.msra.mxu0 0
        %520 = vmatprep.subr.bf16.mxu0 0
        %521 = vmatpush1.bf16.xpose.msra.mxu0 0
        %522 = vmatprep.mubr.bf16.mxu0 0
        %523 = vmatmul.mubr.bf16.gmra.mrb[0].mxu0 %v452
        %v524 = vpop.f32.mrb[0].mxu0
        %v525 = vadd.f32 %v388, %v524
        %v526 = vpop.f32.mrb[0].mxu0
        %v527 = vpop.f32.mrb[0].mxu0
        %v528 = vadd.f32 %v391, %v527
        %v529 = vpop.f32.mrb[0].mxu0
        %530 = vmatprep.mubr.bf16.mxu0 0
        %531 = vmatmul.mubr.bf16.gmra.mrb[0].mxu0 %v455
        %v532 = vpop.f32.mrb[0].mxu0
        %v533 = vadd.f32 %v396, %v532
        %v534 = vpop.f32.mrb[0].mxu0
        %v535 = vpop.f32.mrb[0].mxu0
        %v536 = vadd.f32 %v399, %v535
        %v537 = vpop.f32.mrb[0].mxu0
        %538 = vmatprep.mubr.bf16.mxu0 0
        %539 = vmatmul.mubr.bf16.gmra.mrb[0].mxu0 %v458
        %v540 = vpop.f32.mrb[0].mxu0
        %v541 = vadd.f32 %v404, %v540
        %v542 = vpop.f32.mrb[0].mxu0
        %v543 = vpop.f32.mrb[0].mxu0
        %v544 = vadd.f32 %v407, %v543
        %v545 = vpop.f32.mrb[0].mxu0
        %546 = vmatprep.mubr.bf16.mxu0 0
        %547 = vmatmul.mubr.bf16.gmra.mrb[0].mxu0 %v461
        %v548 = vpop.f32.mrb[0].mxu0
        %v549 = vadd.f32 %v412, %v548
        %v550 = vpop.f32.mrb[0].mxu0
        %v551 = vpop.f32.mrb[0].mxu0
        %v552 = vadd.f32 %v415, %v551
        %v553 = vpop.f32.mrb[0].mxu0
        %554 = vmatprep.mubr.bf16.mxu0 0
        %555 = vmatmul.mubr.bf16.gmra.mrb[0].mxu0 %v464
        %v556 = vpop.f32.mrb[0].mxu0
        %v557 = vadd.f32 %v420, %v556
        %v558 = vpop.f32.mrb[0].mxu0
        %v559 = vpop.f32.mrb[0].mxu0
        %v560 = vadd.f32 %v423, %v559
        %v561 = vpop.f32.mrb[0].mxu0
        %562 = vdwg.mxu0
        %v563 = vld [vmem:[#allocation2 + $0x2] sm:$0xff]
        %v564 = vld [vmem:[#allocation2 + $0xa] sm:$0xff]
        %v565 = vld [vmem:[#allocation2 + $0x12] sm:$0xff]
        %v566 = vld [vmem:[#allocation2 + $0x1a] sm:$0xff]
        %v567 = vld [vmem:[#allocation2 + $0x22] sm:$0xff]
        %v568 = vld [vmem:[#allocation2 + $0x2a] sm:$0xff]
        %v569 = vld [vmem:[#allocation2 + $0x32] sm:$0xff]
        %v570 = vld [vmem:[#allocation2 + $0x3a] sm:$0xff]
        %v571 = vld [vmem:[#allocation2 + $0x42] sm:$0xff]
        %v572 = vld [vmem:[#allocation2 + $0x4a] sm:$0xff]
        %v573 = vld [vmem:[#allocation2 + $0x52] sm:$0xff]
        %v574 = vld [vmem:[#allocation2 + $0x5a] sm:$0xff]
        %v575 = vld [vmem:[#allocation2 + $0x62] sm:$0xff]
        %v576 = vld [vmem:[#allocation2 + $0x6a] sm:$0xff]
        %v577 = vld [vmem:[#allocation2 + $0x72] sm:$0xff]
        %v578 = vld [vmem:[#allocation2 + $0x7a] sm:$0xff]
        %v579 = vpack.c.bf16 %v564, %v563
        %v580 = vpack.c.bf16 %v566, %v565
        %v581 = vpack.c.bf16 %v568, %v567
        %v582 = vpack.c.bf16 %v570, %v569
        %v583 = vpack.c.bf16 %v572, %v571
        %v584 = vpack.c.bf16 %v574, %v573
        %v585 = vpack.c.bf16 %v576, %v575
        %v586 = vpack.c.bf16 %v578, %v577
        %s587 = scalar_lea.vmem %s1, 80
        %v588 = vld [vmem:[%s587] sm:$0xf]
        %v589 = vld [vmem:[%s587 + $0x4] sm:$0xf]
        %v590 = vld [vmem:[%s587 + $0x8] sm:$0xf]
        %v591 = vld [vmem:[%s587 + $0xc] sm:$0xf]
        %v592 = vld [vmem:[%s587 + $0x10] sm:$0xf]
        %v593 = vld [vmem:[%s587 + $0x14] sm:$0xf]
        %v594 = vld [vmem:[%s587 + $0x18] sm:$0xf]
        %v595 = vld [vmem:[%s587 + $0x1c] sm:$0xf]
        %v596 = vld [vmem:[%s587 + $0x20] sm:$0xf]
        %v597 = vld [vmem:[%s587 + $0x24] sm:$0xf]
        %v608 = vunpack.c.l.b16 %v588
        %v609 = vunpack.c.l.b16 %v589
        %v610 = vunpack.c.l.b16 %v590
        %v611 = vunpack.c.l.b16 %v591
        %v612 = vunpack.c.l.b16 %v592
        %v613 = vunpack.c.l.b16 %v593
        %v614 = vunpack.c.l.b16 %v594
        %v615 = vunpack.c.l.b16 %v595
        %v616 = vunpack.c.l.b16 %v596
        %v617 = vunpack.c.l.b16 %v597
        %v618 = vpack.c.b16 %v609, %v608
        %v619 = vpack.c.b16 %v611, %v610
        %v620 = vpack.c.b16 %v613, %v612
        %v621 = vpack.c.b16 %v615, %v614
        %v622 = vpack.c.b16 %v617, %v616
        %v624 = vsel %vm313, %v618, 0
        %v627 = vsel %vm313, %v619, 0
        %v630 = vsel %vm313, %v620, 0
        %v633 = vsel %vm313, %v621, 0
        %v636 = vsel %vm313, %v622, 0
        %v639 = vsel %vm313, %v579, 0
        %v642 = vsel %vm313, %v580, 0
        %v645 = vsel %vm313, %v581, 0
        %v648 = vsel %vm313, %v582, 0
        %v651 = vsel %vm313, %v583, 0
        %v654 = vsel %vm313, %v584, 0
        %v657 = vsel %vm313, %v585, 0
        %v660 = vsel %vm313, %v586, 0
        %662 = vmatprep.subr.bf16.mxu0 0
        %663 = vmatpush1.bf16.xpose.msra.mxu0 %v639
        %664 = vmatprep.subr.bf16.mxu0 0
        %665 = vmatpush1.bf16.xpose.msra.mxu0 %v642
        %666 = vmatprep.subr.bf16.mxu0 0
        %667 = vmatpush1.bf16.xpose.msra.mxu0 %v645
        %668 = vmatprep.subr.bf16.mxu0 0
        %669 = vmatpush1.bf16.xpose.msra.mxu0 %v648
        %670 = vmatprep.subr.bf16.mxu0 0
        %671 = vmatpush1.bf16.xpose.msra.mxu0 %v651
        %672 = vmatprep.subr.bf16.mxu0 0
        %673 = vmatpush1.bf16.xpose.msra.mxu0 %v654
        %674 = vmatprep.subr.bf16.mxu0 0
        %675 = vmatpush1.bf16.xpose.msra.mxu0 %v657
        %676 = vmatprep.subr.bf16.mxu0 0
        %677 = vmatpush1.bf16.xpose.msra.mxu0 %v660
        %678 = vmatprep.subr.bf16.mxu0 0
        %679 = vmatpush1.bf16.xpose.msra.mxu0 0
        %680 = vmatprep.subr.bf16.mxu0 0
        %681 = vmatpush1.bf16.xpose.msra.mxu0 0
        %682 = vmatprep.subr.bf16.mxu0 0
        %683 = vmatpush1.bf16.xpose.msra.mxu0 0
        %684 = vmatprep.subr.bf16.mxu0 0
        %685 = vmatpush1.bf16.xpose.msra.mxu0 0
        %686 = vmatprep.subr.bf16.mxu0 0
        %687 = vmatpush1.bf16.xpose.msra.mxu0 0
        %688 = vmatprep.subr.bf16.mxu0 0
        %689 = vmatpush1.bf16.xpose.msra.mxu0 0
        %690 = vmatprep.subr.bf16.mxu0 0
        %691 = vmatpush1.bf16.xpose.msra.mxu0 0
        %692 = vmatprep.subr.bf16.mxu0 0
        %693 = vmatpush1.bf16.xpose.msra.mxu0 0
        %694 = vmatprep.mubr.bf16.mxu0 0
        %695 = vmatmul.mubr.bf16.gmra.mrb[0].mxu0 %v624
        %v696 = vpop.f32.mrb[0].mxu0
        %v697 = vadd.f32 0.0, %v696
        %v698 = vpop.f32.mrb[0].mxu0
        %v699 = vpop.f32.mrb[0].mxu0
        %v700 = vadd.f32 0.0, %v699
        %v701 = vpop.f32.mrb[0].mxu0
        %702 = vmatprep.mubr.bf16.mxu0 0
        %703 = vmatmul.mubr.bf16.gmra.mrb[0].mxu0 %v627
        %v704 = vpop.f32.mrb[0].mxu0
        %v705 = vadd.f32 0.0, %v704
        %v706 = vpop.f32.mrb[0].mxu0
        %v707 = vpop.f32.mrb[0].mxu0
        %v708 = vadd.f32 0.0, %v707
        %v709 = vpop.f32.mrb[0].mxu0
        %710 = vmatprep.mubr.bf16.mxu0 0
        %711 = vmatmul.mubr.bf16.gmra.mrb[0].mxu0 %v630
        %v712 = vpop.f32.mrb[0].mxu0
        %v713 = vadd.f32 0.0, %v712
        %v714 = vpop.f32.mrb[0].mxu0
        %v715 = vpop.f32.mrb[0].mxu0
        %v716 = vadd.f32 0.0, %v715
        %v717 = vpop.f32.mrb[0].mxu0
        %718 = vmatprep.mubr.bf16.mxu0 0
        %719 = vmatmul.mubr.bf16.gmra.mrb[0].mxu0 %v633
        %v720 = vpop.f32.mrb[0].mxu0
        %v721 = vadd.f32 0.0, %v720
        %v722 = vpop.f32.mrb[0].mxu0
        %v723 = vpop.f32.mrb[0].mxu0
        %v724 = vadd.f32 0.0, %v723
        %v725 = vpop.f32.mrb[0].mxu0
        %726 = vmatprep.mubr.bf16.mxu0 0
        %727 = vmatmul.mubr.bf16.gmra.mrb[0].mxu0 %v636
        %v728 = vpop.f32.mrb[0].mxu0
        %v729 = vadd.f32 0.0, %v728
        %v730 = vpop.f32.mrb[0].mxu0
        %v731 = vpop.f32.mrb[0].mxu0
        %v732 = vadd.f32 0.0, %v731
        %v733 = vpop.f32.mrb[0].mxu0
        %734 = vdwg.mxu0
        %v735 = vadd.f32 %v525, %v697
        %v736 = vadd.f32 %v528, %v700
        %v737 = vadd.f32 %v533, %v705
        %v738 = vadd.f32 %v536, %v708
        %v739 = vadd.f32 %v541, %v713
        %v740 = vadd.f32 %v544, %v716
        %v741 = vadd.f32 %v549, %v721
        %v742 = vadd.f32 %v552, %v724
        %v743 = vadd.f32 %v557, %v729
        %v744 = vadd.f32 %v560, %v732
        %v745 = vld [vmem:[#allocation2 + $0x3] sm:$0xff]
        %v746 = vld [vmem:[#allocation2 + $0xb] sm:$0xff]
        %v747 = vld [vmem:[#allocation2 + $0x13] sm:$0xff]
        %v748 = vld [vmem:[#allocation2 + $0x1b] sm:$0xff]
        %v749 = vld [vmem:[#allocation2 + $0x23] sm:$0xff]
        %v750 = vld [vmem:[#allocation2 + $0x2b] sm:$0xff]
        %v751 = vld [vmem:[#allocation2 + $0x33] sm:$0xff]
        %v752 = vld [vmem:[#allocation2 + $0x3b] sm:$0xff]
        %v753 = vld [vmem:[#allocation2 + $0x43] sm:$0xff]
        %v754 = vld [vmem:[#allocation2 + $0x4b] sm:$0xff]
        %v755 = vld [vmem:[#allocation2 + $0x53] sm:$0xff]
        %v756 = vld [vmem:[#allocation2 + $0x5b] sm:$0xff]
        %v757 = vld [vmem:[#allocation2 + $0x63] sm:$0xff]
        %v758 = vld [vmem:[#allocation2 + $0x6b] sm:$0xff]
        %v759 = vld [vmem:[#allocation2 + $0x73] sm:$0xff]
        %v760 = vld [vmem:[#allocation2 + $0x7b] sm:$0xff]
        %v761 = vpack.c.bf16 %v746, %v745
        %v762 = vpack.c.bf16 %v748, %v747
        %v763 = vpack.c.bf16 %v750, %v749
        %v764 = vpack.c.bf16 %v752, %v751
        %v765 = vpack.c.bf16 %v754, %v753
        %v766 = vpack.c.bf16 %v756, %v755
        %v767 = vpack.c.bf16 %v758, %v757
        %v768 = vpack.c.bf16 %v760, %v759
        %s769 = scalar_lea.vmem %s1, 120
        %v770 = vld [vmem:[%s769] sm:$0xf]
        %v771 = vld [vmem:[%s769 + $0x4] sm:$0xf]
        %v772 = vld [vmem:[%s769 + $0x8] sm:$0xf]
        %v773 = vld [vmem:[%s769 + $0xc] sm:$0xf]
        %v774 = vld [vmem:[%s769 + $0x10] sm:$0xf]
        %v775 = vld [vmem:[%s769 + $0x14] sm:$0xf]
        %v776 = vld [vmem:[%s769 + $0x18] sm:$0xf]
        %v777 = vld [vmem:[%s769 + $0x1c] sm:$0xf]
        %v778 = vld [vmem:[%s769 + $0x20] sm:$0xf]
        %v779 = vld [vmem:[%s769 + $0x24] sm:$0xf]
        %v790 = vunpack.c.l.b16 %v770
        %v791 = vunpack.c.l.b16 %v771
        %v792 = vunpack.c.l.b16 %v772
        %v793 = vunpack.c.l.b16 %v773
        %v794 = vunpack.c.l.b16 %v774
        %v795 = vunpack.c.l.b16 %v775
        %v796 = vunpack.c.l.b16 %v776
        %v797 = vunpack.c.l.b16 %v777
        %v798 = vunpack.c.l.b16 %v778
        %v799 = vunpack.c.l.b16 %v779
        %v800 = vpack.c.b16 %v791, %v790
        %v801 = vpack.c.b16 %v793, %v792
        %v802 = vpack.c.b16 %v795, %v794
        %v803 = vpack.c.b16 %v797, %v796
        %v804 = vpack.c.b16 %v799, %v798
        %v806 = vsel %vm313, %v800, 0
        %v809 = vsel %vm313, %v801, 0
        %v812 = vsel %vm313, %v802, 0
        %v815 = vsel %vm313, %v803, 0
        %v818 = vsel %vm313, %v804, 0
        %v821 = vsel %vm313, %v761, 0
        %v824 = vsel %vm313, %v762, 0
        %v827 = vsel %vm313, %v763, 0
        %v830 = vsel %vm313, %v764, 0
        %v833 = vsel %vm313, %v765, 0
        %v836 = vsel %vm313, %v766, 0
        %v839 = vsel %vm313, %v767, 0
        %v842 = vsel %vm313, %v768, 0
        %844 = vmatprep.subr.bf16.mxu0 0
        %845 = vmatpush1.bf16.xpose.msra.mxu0 %v821
        %846 = vmatprep.subr.bf16.mxu0 0
        %847 = vmatpush1.bf16.xpose.msra.mxu0 %v824
        %848 = vmatprep.subr.bf16.mxu0 0
        %849 = vmatpush1.bf16.xpose.msra.mxu0 %v827
        %850 = vmatprep.subr.bf16.mxu0 0
        %851 = vmatpush1.bf16.xpose.msra.mxu0 %v830
        %852 = vmatprep.subr.bf16.mxu0 0
        %853 = vmatpush1.bf16.xpose.msra.mxu0 %v833
        %854 = vmatprep.subr.bf16.mxu0 0
        %855 = vmatpush1.bf16.xpose.msra.mxu0 %v836
        %856 = vmatprep.subr.bf16.mxu0 0
        %857 = vmatpush1.bf16.xpose.msra.mxu0 %v839
        %858 = vmatprep.subr.bf16.mxu0 0
        %859 = vmatpush1.bf16.xpose.msra.mxu0 %v842
        %860 = vmatprep.subr.bf16.mxu0 0
        %861 = vmatpush1.bf16.xpose.msra.mxu0 0
        %862 = vmatprep.subr.bf16.mxu0 0
        %863 = vmatpush1.bf16.xpose.msra.mxu0 0
        %864 = vmatprep.subr.bf16.mxu0 0
        %865 = vmatpush1.bf16.xpose.msra.mxu0 0
        %866 = vmatprep.subr.bf16.mxu0 0
        %867 = vmatpush1.bf16.xpose.msra.mxu0 0
        %868 = vmatprep.subr.bf16.mxu0 0
        %869 = vmatpush1.bf16.xpose.msra.mxu0 0
        %870 = vmatprep.subr.bf16.mxu0 0
        %871 = vmatpush1.bf16.xpose.msra.mxu0 0
        %872 = vmatprep.subr.bf16.mxu0 0
        %873 = vmatpush1.bf16.xpose.msra.mxu0 0
        %874 = vmatprep.subr.bf16.mxu0 0
        %875 = vmatpush1.bf16.xpose.msra.mxu0 0
        %876 = vmatprep.mubr.bf16.mxu0 0
        %877 = vmatmul.mubr.bf16.gmra.mrb[0].mxu0 %v806
        %v878 = vpop.f32.mrb[0].mxu0
        %v879 = vadd.f32 0.0, %v878
        %v880 = vpop.f32.mrb[0].mxu0
        %v881 = vpop.f32.mrb[0].mxu0
        %v882 = vadd.f32 0.0, %v881
        %v883 = vpop.f32.mrb[0].mxu0
        %884 = vmatprep.mubr.bf16.mxu0 0
        %885 = vmatmul.mubr.bf16.gmra.mrb[0].mxu0 %v809
        %v886 = vpop.f32.mrb[0].mxu0
        %v887 = vadd.f32 0.0, %v886
        %v888 = vpop.f32.mrb[0].mxu0
        %v889 = vpop.f32.mrb[0].mxu0
        %v890 = vadd.f32 0.0, %v889
        %v891 = vpop.f32.mrb[0].mxu0
        %892 = vmatprep.mubr.bf16.mxu0 0
        %893 = vmatmul.mubr.bf16.gmra.mrb[0].mxu0 %v812
        %v894 = vpop.f32.mrb[0].mxu0
        %v895 = vadd.f32 0.0, %v894
        %v896 = vpop.f32.mrb[0].mxu0
        %v897 = vpop.f32.mrb[0].mxu0
        %v898 = vadd.f32 0.0, %v897
        %v899 = vpop.f32.mrb[0].mxu0
        %900 = vmatprep.mubr.bf16.mxu0 0
        %901 = vmatmul.mubr.bf16.gmra.mrb[0].mxu0 %v815
        %v902 = vpop.f32.mrb[0].mxu0
        %v903 = vadd.f32 0.0, %v902
        %v904 = vpop.f32.mrb[0].mxu0
        %v905 = vpop.f32.mrb[0].mxu0
        %v906 = vadd.f32 0.0, %v905
        %v907 = vpop.f32.mrb[0].mxu0
        %908 = vmatprep.mubr.bf16.mxu0 0
        %909 = vmatmul.mubr.bf16.gmra.mrb[0].mxu0 %v818
        %v910 = vpop.f32.mrb[0].mxu0
        %v911 = vadd.f32 0.0, %v910
        %v912 = vpop.f32.mrb[0].mxu0
        %v913 = vpop.f32.mrb[0].mxu0
        %v914 = vadd.f32 0.0, %v913
        %v915 = vpop.f32.mrb[0].mxu0
        %916 = vdwg.mxu0
        %v917 = vadd.f32 %v735, %v879
        %v918 = vadd.f32 %v736, %v882
        %v919 = vadd.f32 %v737, %v887
        %v920 = vadd.f32 %v738, %v890
        %v921 = vadd.f32 %v739, %v895
        %v922 = vadd.f32 %v740, %v898
        %v923 = vadd.f32 %v741, %v903
        %v924 = vadd.f32 %v742, %v906
        %v925 = vadd.f32 %v743, %v911
        %v926 = vadd.f32 %v744, %v914
        %v927 = vmul.f32 %v917, %v917
        %v928 = vmul.f32 %v918, %v918
        %v929 = vmul.f32 %v919, %v919
        %v930 = vmul.f32 %v920, %v920
        %v931 = vmul.f32 %v921, %v921
        %v932 = vmul.f32 %v922, %v922
        %v933 = vmul.f32 %v923, %v923
        %v934 = vmul.f32 %v924, %v924
        %v935 = vmul.f32 %v925, %v925
        %v936 = vmul.f32 %v926, %v926
        %v937 = vld [vmem:[%s2] sm:$0xff]
        %v938 = vld [vmem:[%s2 + $0x8] sm:$0xff]
        %vm939 = vcmask 654336
        %v941 = vsel %vm939, %v937, 0
        %v944 = vsel %vm939, %v938, 0
        %946 = vmatprep.subr.mxu0 0.0
        %947 = vmatpush1.msra.mxu0 %v927
        %948 = vmatprep.subr.mxu0 0.0
        %949 = vmatpush1.msra.mxu0 %v928
        %950 = vmatprep.subr.mxu0 0.0
        %951 = vmatpush1.msra.mxu0 %v929
        %952 = vmatprep.subr.mxu0 0.0
        %953 = vmatpush1.msra.mxu0 %v930
        %954 = vmatprep.subr.mxu0 0.0
        %955 = vmatpush1.msra.mxu0 %v931
        %956 = vmatprep.subr.mxu0 0.0
        %957 = vmatpush1.msra.mxu0 %v932
        %958 = vmatprep.subr.mxu0 0.0
        %959 = vmatpush1.msra.mxu0 %v933
        %960 = vmatprep.subr.mxu0 0.0
        %961 = vmatpush1.msra.mxu0 %v934
        %962 = vmatprep.subr.mxu0 0.0
        %963 = vmatpush1.msra.mxu0 %v935
        %964 = vmatprep.subr.mxu0 0.0
        %965 = vmatpush1.msra.mxu0 %v936
        %966 = vmatprep.subr.mxu0 0.0
        %967 = vmatpush1.msra.mxu0 0.0
        %968 = vmatprep.subr.mxu0 0.0
        %969 = vmatpush1.msra.mxu0 0.0
        %970 = vmatprep.subr.mxu0 0.0
        %971 = vmatpush1.msra.mxu0 0.0
        %972 = vmatprep.subr.mxu0 0.0
        %973 = vmatpush1.msra.mxu0 0.0
        %974 = vmatprep.subr.mxu0 0.0
        %975 = vmatpush1.msra.mxu0 0.0
        %976 = vmatprep.subr.mxu0 0.0
        %977 = vmatpush1.msra.mxu0 0.0
        %978 = vmatprep.subr.mxu0 0.0
        %979 = vmatpush1.msra.mxu0 0.0
        %980 = vmatprep.subr.mxu0 0.0
        %981 = vmatpush1.msra.mxu0 0.0
        %982 = vmatprep.subr.mxu0 0.0
        %983 = vmatpush1.msra.mxu0 0.0
        %984 = vmatprep.subr.mxu0 0.0
        %985 = vmatpush1.msra.mxu0 0.0
        %986 = vmatprep.subr.mxu0 0.0
        %987 = vmatpush1.msra.mxu0 0.0
        %988 = vmatprep.subr.mxu0 0.0
        %989 = vmatpush1.msra.mxu0 0.0
        %990 = vmatprep.subr.mxu0 0.0
        %991 = vmatpush1.msra.mxu0 0.0
        %992 = vmatprep.subr.mxu0 0.0
        %993 = vmatpush1.msra.mxu0 0.0
        %994 = vmatprep.subr.mxu0 0.0
        %995 = vmatpush1.msra.mxu0 0.0
        %996 = vmatprep.subr.mxu0 0.0
        %997 = vmatpush1.msra.mxu0 0.0
        %998 = vmatprep.subr.mxu0 0.0
        %999 = vmatpush1.msra.mxu0 0.0
        %1000 = vmatprep.subr.mxu0 0.0
        %1001 = vmatpush1.msra.mxu0 0.0
        %1002 = vmatprep.subr.mxu0 0.0
        %1003 = vmatpush1.msra.mxu0 0.0
        %1004 = vmatprep.subr.mxu0 0.0
        %1005 = vmatpush1.msra.mxu0 0.0
        %1006 = vmatprep.subr.mxu0 0.0
        %1007 = vmatpush1.msra.mxu0 0.0
        %1008 = vmatprep.subr.mxu0 0.0
        %1009 = vmatpush1.msra.mxu0 0.0
        %1010 = vmatprep.mubr.f32.mxu0 0.0
        %1011 = vmatmul.mubr.f32.gmra.mrb[0].mxu0 %v941
        %v1012 = vpop.f32.mrb[0].mxu0
        %v1013 = vadd.f32 1e-12, %v1012
        %v1014 = vpop.f32.mrb[0].mxu0
        %1015 = vmatprep.mubr.f32.mxu0 0.0
        %1016 = vmatmul.mubr.f32.gmra.mrb[0].mxu0 %v944
        %v1017 = vpop.f32.mrb[0].mxu0
        %v1018 = vadd.f32 1e-12, %v1017
        %v1019 = vpop.f32.mrb[0].mxu0
        %1020 = vdwg.mxu0
        %v1021 = vlog2.pop %v1013
        %v1022 = vmul.f32 %v1021, 0.6931472
        %v1023 = vlog2.pop %v1018
        %v1024 = vmul.f32 %v1023, 0.6931472
        %1025 = vst [vmem:[%s136] sm:$0xff] %v1022
        %1026 = vst [vmem:[%s136 + $0x8] sm:$0xff] %v1024
        %s1027 = sand.u32 %s81, 1
        %s1028 = scalar_lea.sflag [#allocation5], %s1027
        %s1029 = sand.u32 %s81, 1
        %s1030 = smul.addr %s1029, 16
        %s1031 = scalar_lea.vmem [#allocation4], %s1030
        // Predicated region
        $region63: #{tpu_custom_call.1} parent=27 // pred_check
          %p1032 = pneg %p91
        $region64: #{tpu_custom_call.1} parent=27 // pred_check_branch
          %1034 = sbr.rel (%p1032) target = $region66
        $region65: #{tpu_custom_call.1} parent=27 // pred_region
          %s1036 = ssub.s32 256, 256
          %1037 = vsyncadd %s1028, %s1036
          %s1038 = smul.addr %s21, 2
          %s1039 = sadd.s32 %s22, %s1038
          %s1040 = smul.addr %s1039, 128
          %s1041 = scalar_lea.hbm %s3, %s1040
          %s1042 = sshll.u32 %s1031, 4
          %s1043 = int_to_ptr.vmem [resolvable:$true] %s1042
          %1048 = dma.vmem_to_hbm [thread:$0]  %s1043, 256, %s1041, %s1028, 128, 128, 8
        $region66: #{tpu_custom_call.1} parent=27 // pred_fallthru
          _
      $region28: #{tpu_custom_call.1} parent=5 // pred_fallthru
        _
      %p1049 = scmp.le.s32.totalorder 2, %s12
      // Predicated region
      $region67: #{tpu_custom_call.1} parent=5 // pred_check
        %p1050 = pneg %p1049
      $region68: #{tpu_custom_call.1} parent=5 // pred_check_branch
        %1052 = sbr.rel (%p1050) target = $region70
      $region69: #{tpu_custom_call.1} parent=5 // pred_region
        %s1053 = ssub.s32 %s12, 2
        // Predicated region
        $region71: #{tpu_custom_call.1} parent=69 // pred_check
          %p1054 = pneg %p97
        $region72: #{tpu_custom_call.1} parent=69 // pred_check_branch
          %1056 = sbr.rel (%p1054) target = $region74
        $region73: #{tpu_custom_call.1} parent=69 // pred_region
          %s1057 = sand.u32 %s82, 1
          %s1058 = scalar_lea.sflag [#allocation5], %s1057
          %s1059 = sand.u32 %s82, 1
          %s1060 = smul.addr %s1059, 16
          %s1061 = scalar_lea.vmem [#allocation4], %s1060
          %1062 = dma.done %s1058, 256
        $region74: #{tpu_custom_call.1} parent=69 // pred_fallthru
          _
      $region70: #{tpu_custom_call.1} parent=5 // pred_fallthru
        _
    $region6: #{tpu_custom_call.1} parent=1 // loop_footer
      %s16 = sadd.s32 1, %s12
    $region7: #{tpu_custom_call.1} parent=1 // loop_footer_branch
      %11 = sbr.rel target = $region3
    $region8: #{tpu_custom_call.1} parent=1 // loop_exit
      _
    %1063 = vsyncpa [#allocation5], 1
    %s1064 = scalar_lea.sflag [#allocation5], 1
    %1065 = vsyncpa %s1064, 1
  %1066 = vsyncmov [#allocation3]
  %s1067 = vpop.sfrf %1066
  %p1068 = scmp.eq.s32.totalorder %s1067, 0
  %p1069 = pneg %p1068
  %1071 = shalt.err (%p1069)

</llo_original>
